<compile_context>
chip_gen: v7x
topology: tpu7x:2x2x1
jax: 0.10.0
libtpu: 0.0.40
codegen_flags: <defaults>
</compile_context>

<pallas_src>
import functools

import jax
import jax.numpy as jnp
from jax.experimental import pallas as pl
from jax.experimental.pallas import tpu as pltpu


def _round_up(x, m):
    return ((x + m - 1) // m) * m


def _smooth_loss_kernel(a_ref, p_ref, n_ref, out_ref, *, margin, n_rows, tile_n):
    k = pl.program_id(0)
    last = pl.num_programs(0) - 1

    @pl.when(k == 0)
    def _():
        out_ref[...] = jnp.zeros_like(out_ref)

    # Upcast after the (native-dtype) load; the cast hides under the DMA.
    a = a_ref[...].astype(jnp.float32)
    p = p_ref[...].astype(jnp.float32)
    n = n_ref[...].astype(jnp.float32)

    dap = a - p
    dan = a - n
    dp = jnp.sqrt(jnp.sum(dap * dap, axis=1, keepdims=True))   # (tile_n, 1)
    dn = jnp.sqrt(jnp.sum(dan * dan, axis=1, keepdims=True))   # (tile_n, 1)
    losses = jnp.maximum(dp - dn + margin, 0.0)                 # (tile_n, 1)

    def _accumulate(vals):
        out_ref[...] += jnp.sum(vals)

    rem = n_rows % tile_n
    if rem == 0:
        # Every tile is full: no row mask needed anywhere.
        _accumulate(losses)
    else:
        # Only the last tile straddles n_rows; mask it there and nowhere else.
        @pl.when(k != last)
        def _():
            _accumulate(losses)

        @pl.when(k == last)
        def _():
            rows = jax.lax.broadcasted_iota(jnp.int32, losses.shape, 0)
            _accumulate(jnp.where(rows < rem, losses, jnp.float32(0.0)))


def smooth_loss(anchor, positive, negative, margin=1.0):
    assert anchor.shape == positive.shape == negative.shape
    assert anchor.ndim == 2
    n_rows, d = anchor.shape

    itemsize = jnp.dtype(anchor.dtype).itemsize
    # Sublane packing quantum: f32 -> 8, bf16 -> 16, int8/fp8 -> 32.
    sublane = max(8, 32 // max(itemsize, 1))

    # Generation-aware VMEM sizing: big buffers on 128 MiB parts (v5e/v6e),
    # conservative on v7x's 64 MiB VMEM. Fall back conservatively if the query
    # is unavailable.
    try:
        vmem_capacity = pltpu.get_tpu_info().vmem_capacity_bytes
    except Exception:  # pragma: no cover - defensive fallback
        vmem_capacity = 64 * 1024 * 1024
    if vmem_capacity >= 128 * 1024 * 1024:
        buf_budget = 48 * 1024 * 1024
        vmem_limit = 96 * 1024 * 1024
    else:
        buf_budget = 24 * 1024 * 1024
        vmem_limit = 48 * 1024 * 1024

    # Largest row tile whose double-buffered footprint
    # (3 inputs x 2 buffers x tile_n x d x itemsize) fits the budget.
    row_bytes = 3 * 2 * d * itemsize
    tile_cap = max(sublane, (buf_budget // row_bytes) // sublane * sublane)
    tile_n = min(tile_cap, 65536, _round_up(n_rows, sublane))
    steps = pl.cdiv(n_rows, tile_n)

    kernel = functools.partial(
        _smooth_loss_kernel,
        margin=float(margin), n_rows=n_rows, tile_n=tile_n,
    )

    # Last block dim equals the full feature dim -> exempt from the 128-lane
    # divisibility rule, so no feature padding and no host-side copies.
    in_spec = pl.BlockSpec((tile_n, d), lambda k: (k, 0))
    out_spec = pl.BlockSpec((1, 1), lambda k: (0, 0))  # resident accumulator

    out = pl.pallas_call(
        kernel,
        out_shape=jax.ShapeDtypeStruct((1, 1), jnp.float32),
        grid=(steps,),
        in_specs=[in_spec, in_spec, in_spec],
        out_specs=out_spec,
        compiler_params=pltpu.CompilerParams(
            dimension_semantics=("arbitrary",),
            vmem_limit_bytes=vmem_limit,
        ),
        cost_estimate=pl.CostEstimate(
            flops=8 * n_rows * d,
            transcendentals=2 * n_rows,
            bytes_accessed=3 * n_rows * d * itemsize + 4,
        ),
    )(anchor, positive, negative)

    # mean = sum * (1/N); the divide stays outside the kernel.
    return out[0, 0] * (1.0 / n_rows)


def _reference(anchor, positive, negative, margin=1.0):
    dp = jnp.linalg.norm(anchor.astype(jnp.float32)
                         - positive.astype(jnp.float32), axis=1)
    dn = jnp.linalg.norm(anchor.astype(jnp.float32)
                         - negative.astype(jnp.float32), axis=1)
    return jnp.mean(jnp.maximum(dp - dn + margin, 0.0))


if __name__ == "__main__":
    key = jax.random.PRNGKey(0)
    k1, k2, k3 = jax.random.split(key, 3)

    N, D = 8, 32   # small (batch, feature) inputs consistent with the module
    anchor = jax.random.normal(k1, (N, D), dtype=jnp.float32)
    positive = jax.random.normal(k2, (N, D), dtype=jnp.float32)
    negative = jax.random.normal(k3, (N, D), dtype=jnp.float32)

    out = smooth_loss(anchor, positive, negative, margin=1.0)
    out = jax.block_until_ready(out)

    ref = _reference(anchor, positive, negative, margin=1.0)
    assert jnp.allclose(out, ref, rtol=1e-5, atol=1e-5), (out, ref)

    print("KERNEL_OK")
</pallas_src>

<mosaic_0001>
module attributes {stable_mosaic.version = 11 : i64} {
  func.func @_smooth_loss_kernel(%arg0: i32, %arg1: memref<8x32xf32, #tpu.memory_space<vmem>>, %arg2: memref<8x32xf32, #tpu.memory_space<vmem>>, %arg3: memref<8x32xf32, #tpu.memory_space<vmem>>, %arg4: memref<1x1xf32, #tpu.memory_space<vmem>>) attributes {dimension_semantics = [#tpu.dimension_semantics<arbitrary>], iteration_bounds = array<i64: 1>, scalar_prefetch = 0 : i64, scratch_operands = 0 : i64, tpu.core_type = #tpu.core_type<tc>, window_params = [{transform_indices = @transform_0, window_bounds = array<i64: 8, 32>}, {transform_indices = @transform_1, window_bounds = array<i64: 8, 32>}, {transform_indices = @transform_2, window_bounds = array<i64: 8, 32>}, {pipeline_mode = #tpu.pipeline_mode<synchronous>, transform_indices = @transform_3, window_bounds = array<i64: 1, 1>}]} {
    %c0_i32 = arith.constant 0 : i32
    %0 = arith.cmpi eq, %arg0, %c0_i32 : i32
    %1 = arith.extui %0 : i1 to i32
    %c0_i32_0 = arith.constant 0 : i32
    %2 = arith.cmpi ne, %1, %c0_i32_0 : i32
    scf.if %2 {
      %cst_14 = arith.constant 0.000000e+00 : f32
      %29 = vector.broadcast %cst_14 : f32 to vector<1x1xf32>
      %c0_15 = arith.constant 0 : index
      %c0_16 = arith.constant 0 : index
      %30 = vector.load %arg4[%c0_15, %c0_16] : memref<1x1xf32, #tpu.memory_space<vmem>>, vector<1x1xf32>
      tpu.vector_store %arg4[%c0_15, %c0_16], %29 {strides = array<i32>} : memref<1x1xf32, #tpu.memory_space<vmem>>, vector<1x1xf32>,
    } else {
    }
    %c0 = arith.constant 0 : index
    %c0_1 = arith.constant 0 : index
    %3 = vector.load %arg1[%c0, %c0_1] : memref<8x32xf32, #tpu.memory_space<vmem>>, vector<8x32xf32>
    %c0_2 = arith.constant 0 : index
    %c0_3 = arith.constant 0 : index
    %4 = vector.load %arg2[%c0_2, %c0_3] : memref<8x32xf32, #tpu.memory_space<vmem>>, vector<8x32xf32>
    %c0_4 = arith.constant 0 : index
    %c0_5 = arith.constant 0 : index
    %5 = vector.load %arg3[%c0_4, %c0_5] : memref<8x32xf32, #tpu.memory_space<vmem>>, vector<8x32xf32>
    %6 = arith.subf %3, %4 : vector<8x32xf32>
    %7 = arith.subf %3, %5 : vector<8x32xf32>
    %8 = arith.mulf %6, %6 : vector<8x32xf32>
    %cst = arith.constant dense<0.000000e+00> : vector<8xf32>
    %9 = vector.multi_reduction <add>, %8, %cst [1] : vector<8x32xf32> to vector<8xf32>
    %10 = vector.shape_cast %9 : vector<8xf32> to vector<8x1xf32>
    %11 = math.sqrt %10 : vector<8x1xf32>
    %12 = arith.mulf %7, %7 : vector<8x32xf32>
    %cst_6 = arith.constant dense<0.000000e+00> : vector<8xf32>
    %13 = vector.multi_reduction <add>, %12, %cst_6 [1] : vector<8x32xf32> to vector<8xf32>
    %14 = vector.shape_cast %13 : vector<8xf32> to vector<8x1xf32>
    %15 = math.sqrt %14 : vector<8x1xf32>
    %16 = arith.subf %11, %15 : vector<8x1xf32>
    %cst_7 = arith.constant 1.000000e+00 : f32
    %17 = vector.broadcast %cst_7 : f32 to vector<8x1xf32>
    %18 = arith.addf %16, %17 : vector<8x1xf32>
    %cst_8 = arith.constant 0.000000e+00 : f32
    %19 = vector.broadcast %cst_8 : f32 to vector<8x1xf32>
    %20 = arith.maximumf %18, %19 : vector<8x1xf32>
    %c0_9 = arith.constant 0 : index
    %c0_10 = arith.constant 0 : index
    %21 = vector.load %arg4[%c0_9, %c0_10] : memref<1x1xf32, #tpu.memory_space<vmem>>, vector<1x1xf32>
    %22 = vector.shape_cast %20 : vector<8x1xf32> to vector<1x8x1xf32>
    %cst_11 = arith.constant dense<0.000000e+00> : vector<1xf32>
    %23 = vector.multi_reduction <add>, %22, %cst_11 [1, 2] : vector<1x8x1xf32> to vector<1xf32>
    %24 = vector.shape_cast %23 : vector<1xf32> to vector<1x1x1xf32>
    %25 = vector.extract %24[0, 0, 0] : f32 from vector<1x1x1xf32>
    %26 = vector.broadcast %25 : f32 to vector<1x1xf32>
    %27 = arith.addf %21, %26 : vector<1x1xf32>
    %c0_12 = arith.constant 0 : index
    %c0_13 = arith.constant 0 : index
    %28 = vector.load %arg4[%c0_12, %c0_13] : memref<1x1xf32, #tpu.memory_space<vmem>>, vector<1x1xf32>
    tpu.vector_store %arg4[%c0_12, %c0_13], %27 {strides = array<i32>} : memref<1x1xf32, #tpu.memory_space<vmem>>, vector<1x1xf32>,
    return
  }
  func.func @transform_0(%arg0: i32) -> (i32, i32) {
    %c0_i32 = arith.constant 0 : i32
    %c0_i32_0 = arith.constant 0 : i32
    return %arg0, %c0_i32 : i32, i32
  }
  func.func @transform_1(%arg0: i32) -> (i32, i32) {
    %c0_i32 = arith.constant 0 : i32
    %c0_i32_0 = arith.constant 0 : i32
    return %arg0, %c0_i32 : i32, i32
  }
  func.func @transform_2(%arg0: i32) -> (i32, i32) {
    %c0_i32 = arith.constant 0 : i32
    %c0_i32_0 = arith.constant 0 : i32
    return %arg0, %c0_i32 : i32, i32
  }
  func.func @transform_3(%arg0: i32) -> (i32, i32) {
    %c0_i32 = arith.constant 0 : i32
    %c0_i32_0 = arith.constant 0 : i32
    %c0_i32_1 = arith.constant 0 : i32
    return %c0_i32, %c0_i32_0 : i32, i32
  }
}

</mosaic_0001>

<llo_original>
// kernel: tpu_custom_call.1
$region0: #{tpu_custom_call.1}
  #allocation0 [shape = 'u32[]', space=smem, size = 0x4, offset = 0x4, fixed_abs, tag = 'smem constant byte address 0x4 - core index']
  #allocation1 [shape = 'u32[144,128]{1,0:T(1,128)}', space=vmem, size = 0x12000, scoped, tag = 'internal scratch']
  %s0 = inlined_call_operand.hbm [shape: f32[8,32], index: 0, kind: input, shape index: {}]
  %s1 = inlined_call_operand.hbm [shape: f32[8,32], index: 1, kind: input, shape index: {}]
  %s2 = inlined_call_operand.hbm [shape: f32[8,32], index: 2, kind: input, shape index: {}]
  %s3 = inlined_call_operand.hbm [shape: f32[1,1], index: 3, kind: output, shape index: {}]
  %s4 = sld [smem:[#allocation0]]
  $region38: #{tpu_custom_call.1} parent=0
    _
  %s6 = ssub.s32 1, %s4
  %s7 = scalar_select 0, %s6, %s4
  $region1: #{tpu_custom_call.1} parent=0
    #allocation2 [shape = 'u8[4096]{0}', space=vmem, size = 0x1000, scoped, tag = 'input window, operand 0, single buffered']
    #allocation3 [shape = 's32[1]{0}', space=sflag, size = 0x4, scoped, tag = 'scoped memory for tpu_custom_call.1']
    #allocation4 [shape = 's32[1]{0}', space=sflag, size = 0x4, scoped, tag = 'scoped memory for tpu_custom_call.1']
    #allocation5 [shape = 'u8[4096]{0}', space=vmem, size = 0x1000, scoped, tag = 'input window, operand 1, single buffered']
    #allocation6 [shape = 's32[1]{0}', space=sflag, size = 0x4, scoped, tag = 'scoped memory for tpu_custom_call.1']
    #allocation7 [shape = 'u8[4096]{0}', space=vmem, size = 0x1000, scoped, tag = 'input window, operand 2, single buffered']
    #allocation8 [shape = 'u8[512]{0}', space=vmem, size = 0x400, scoped, tag = 'output window, operand 0, single buffered']
    %8 = vsyncpa [#allocation3], 0
    %9 = vsyncpa [#allocation6], 0
    %10 = vsyncpa [#allocation4], 0
    // Predicated region
    $region2: #{tpu_custom_call.1} parent=1 // pred_check
      _
    $region3: #{tpu_custom_call.1} parent=1 // pred_check_branch
      %12 = sbr.rel (0) target = $region5
    $region4: #{tpu_custom_call.1} parent=1 // pred_region
      %s14 = ssub.s32 128, 128
      %15 = vsyncadd [#allocation3], %s14
      %s17 = sshll.u32 [#allocation2], 4
      %s18 = int_to_ptr.vmem [resolvable:$true] %s17
      %20 = dma.hbm_to_vmem [thread:$0]  %s0, 128, %s18, [#allocation3]
    $region5: #{tpu_custom_call.1} parent=1 // pred_fallthru
      _
    // Predicated region
    $region6: #{tpu_custom_call.1} parent=1 // pred_check
      _
    $region7: #{tpu_custom_call.1} parent=1 // pred_check_branch
      %22 = sbr.rel (0) target = $region9
    $region8: #{tpu_custom_call.1} parent=1 // pred_region
      %s24 = ssub.s32 128, 128
      %25 = vsyncadd [#allocation6], %s24
      %s27 = sshll.u32 [#allocation5], 4
      %s28 = int_to_ptr.vmem [resolvable:$true] %s27
      %30 = dma.hbm_to_vmem [thread:$0]  %s1, 128, %s28, [#allocation6]
    $region9: #{tpu_custom_call.1} parent=1 // pred_fallthru
      _
    // Predicated region
    $region10: #{tpu_custom_call.1} parent=1 // pred_check
      _
    $region11: #{tpu_custom_call.1} parent=1 // pred_check_branch
      %32 = sbr.rel (0) target = $region13
    $region12: #{tpu_custom_call.1} parent=1 // pred_region
      %s34 = ssub.s32 128, 128
      %35 = vsyncadd [#allocation6], %s34
      %s37 = sshll.u32 [#allocation7], 4
      %s38 = int_to_ptr.vmem [resolvable:$true] %s37
      %40 = dma.hbm_to_vmem [thread:$0]  %s2, 128, %s38, [#allocation6]
    $region13: #{tpu_custom_call.1} parent=1 // pred_fallthru
      _
    // Predicated region
    $region14: #{tpu_custom_call.1} parent=1 // pred_check
      _
    $region15: #{tpu_custom_call.1} parent=1 // pred_check_branch
      %42 = sbr.rel (0) target = $region17
    $region16: #{tpu_custom_call.1} parent=1 // pred_region
      %43 = dma.done [#allocation3], 128
    $region17: #{tpu_custom_call.1} parent=1 // pred_fallthru
      _
    // Predicated region
    $region18: #{tpu_custom_call.1} parent=1 // pred_check
      _
    $region19: #{tpu_custom_call.1} parent=1 // pred_check_branch
      %45 = sbr.rel (0) target = $region21
    $region20: #{tpu_custom_call.1} parent=1 // pred_region
      %46 = dma.done [#allocation6], 128
    $region21: #{tpu_custom_call.1} parent=1 // pred_fallthru
      _
    // Predicated region
    $region22: #{tpu_custom_call.1} parent=1 // pred_check
      _
    $region23: #{tpu_custom_call.1} parent=1 // pred_check_branch
      %48 = sbr.rel (0) target = $region25
    $region24: #{tpu_custom_call.1} parent=1 // pred_region
      %49 = dma.done [#allocation6], 128
    $region25: #{tpu_custom_call.1} parent=1 // pred_fallthru
      _
    %p50 = scmp.eq.s32.totalorder 0, 0
    // Predicated region
    $region26: #{tpu_custom_call.1} parent=1 // pred_check
      %p51 = pneg %p50
    $region27: #{tpu_custom_call.1} parent=1 // pred_check_branch
      %53 = sbr.rel (%p51) target = $region29
    $region28: #{tpu_custom_call.1} parent=1 // pred_region
      %vm54 = vcmask 0
      %55 = vst.msk [vmem:[#allocation8] sm:$0x1] %vm54, 0.0
    $region29: #{tpu_custom_call.1} parent=1 // pred_fallthru
      _
    %v56 = vld [vmem:[#allocation2] sm:$0xff]
    %v57 = vld [vmem:[#allocation5] sm:$0xff]
    %v58 = vld [vmem:[#allocation7] sm:$0xff]
    %v59 = vsub.f32 %v56, %v57
    %v60 = vsub.f32 %v56, %v58
    %v61 = vmul.f32 %v59, %v59
    %vm62 = vcmask 261120
    %v63 = vsel %vm62, %v61, 0.0
    %64 = vadd.xlane.f32.xlu0 %v63
    %v65 = vpop.xlane.xlu0 %64
    %v66 = vrsqrt.pop %v65
    %v67 = vmul.f32 %v65, %v66
    %vm68 = vcmp.eq.f32.partialorder %v65, inf
    %v69 = vsel %vm68, %v65, %v67
    %vm70 = vcmp.eq.f32.partialorder %v65, 0.0
    %v71 = vand.u32 %v65, 2147483648
    %v72 = vsel %vm70, %v71, %v69
    %v73 = vmul.f32 %v60, %v60
    %v74 = vsel %vm62, %v73, 0.0
    %75 = vadd.xlane.f32.xlu0 %v74
    %v76 = vpop.xlane.xlu0 %75
    %v77 = vrsqrt.pop %v76
    %v78 = vmul.f32 %v76, %v77
    %vm79 = vcmp.eq.f32.partialorder %v76, inf
    %v80 = vsel %vm79, %v76, %v78
    %vm81 = vcmp.eq.f32.partialorder %v76, 0.0
    %v82 = vand.u32 %v76, 2147483648
    %v83 = vsel %vm81, %v82, %v80
    %v84 = vsub.f32 %v72, %v83
    %v85 = vadd.f32 %v84, 1.0
    %v86 = vmax.f32 %v85, 0.0
    %v87 = vld [vmem:[#allocation8] sm:$0x1]
    %vm88 = vcmask 7168
    %v89 = vsel %vm88, %v86, 0.0
    %90 = vadd.xlane.f32.xlu0 %v89
    %v91 = vpop.xlane.xlu0 %90
    %v92 = vrot.slane %v91, 4
    %v93 = vadd.f32 %v91, %v92
    %v94 = vrot.slane %v93, 2
    %v95 = vadd.f32 %v93, %v94
    %v96 = vrot.slane %v95, 1
    %v97 = vadd.f32 %v95, %v96
    %s98 = vtos %v97
    %v99 = vstv %s98
    %v100 = vadd.f32 %v87, %v99
    %vm101 = vcmask 0
    %102 = vst.msk [vmem:[#allocation8] sm:$0x1] %vm101, %v100
    // Predicated region
    $region30: #{tpu_custom_call.1} parent=1 // pred_check
      _
    $region31: #{tpu_custom_call.1} parent=1 // pred_check_branch
      %104 = sbr.rel (0) target = $region33
    $region32: #{tpu_custom_call.1} parent=1 // pred_region
      %s106 = ssub.s32 16, 16
      %107 = vsyncadd [#allocation4], %s106
      %s109 = sshll.u32 [#allocation8], 4
      %s110 = int_to_ptr.vmem [resolvable:$true] %s109
      %112 = dma.vmem_to_hbm [thread:$0]  %s110, 16, %s3, [#allocation4]
    $region33: #{tpu_custom_call.1} parent=1 // pred_fallthru
      _
    // Predicated region
    $region34: #{tpu_custom_call.1} parent=1 // pred_check
      _
    $region35: #{tpu_custom_call.1} parent=1 // pred_check_branch
      %114 = sbr.rel (0) target = $region37
    $region36: #{tpu_custom_call.1} parent=1 // pred_region
      %115 = dma.done [#allocation4], 16
    $region37: #{tpu_custom_call.1} parent=1 // pred_fallthru
      _
    %116 = vsyncpa [#allocation3], 1
    %117 = vsyncpa [#allocation6], 1
    %118 = vsyncpa [#allocation4], 1

</llo_original>
